<compile_context>
chip_gen: v5e
topology: v5e:2x2
jax: 0.10.0
libtpu: 0.0.40
codegen_flags: <defaults>
</compile_context>

<pallas_src>
import jax
import jax.numpy as jnp
from jax.experimental import pallas as pl
from jax.experimental.pallas import tpu as pltpu

INPUT_DIM = 24
HIDDEN_DIM = 200
HIDDEN_PAD = 256        # 2 full 128-lane vregs per row-group
OUT_DIM = 1
_TB_MAX = 1024          # batch rows per grid step (>=512 reaches ~85% HBM roofline)


def _round_up(n, m):
    return ((n + m - 1) // m) * m


def mlp_kernel(x_ref, w1_ref, b1_ref, w2_ref, b2_ref, o_ref):
    # x_ref : (TB, INPUT_DIM)        current batch tile
    # w1_ref: (HIDDEN_PAD, INPUT_DIM)   (PyTorch orientation, zero-padded rows)
    # b1_ref: (HIDDEN_PAD, 1)
    # w2_ref: (1, HIDDEN_PAD)
    # b2_ref: (1, 1)
    # o_ref : (1, TB)                lane-dense output row for this tile
    x = x_ref[...]

    # h^T = W1 @ x^T : contract the shared INPUT_DIM axis of both operands.
    h_t = jax.lax.dot_general(
        w1_ref[...], x,
        dimension_numbers=(((1,), (1,)), ((), ())),
        preferred_element_type=jnp.float32,
    )                                                # (HIDDEN_PAD, TB)

    h_t = jnp.maximum(h_t + b1_ref[...], 0.0)        # bias (lane-broadcast) + ReLU
    # Dropout(p=0.0) -> identity, nothing to do.

    # y^T = W2 @ h^T : produces the lane-dense (1, TB) output row directly.
    out_row = jnp.dot(w2_ref[...], h_t,
                      preferred_element_type=jnp.float32)   # (1, TB)
    o_ref[...] = (out_row + b2_ref[...]).astype(o_ref.dtype)


def two_layer_mlp(x, w1, b1, w2, b2):
    """Forward pass of TwoLayerMLP.

    x : (B, INPUT_DIM) float32
    w1: (HIDDEN_DIM, INPUT_DIM)   -- PyTorch nn.Linear weight orientation
    b1: (HIDDEN_DIM,)
    w2: (OUT_DIM, HIDDEN_DIM)
    b2: (OUT_DIM,)
    returns: (B, OUT_DIM)
    """
    B = x.shape[0]

    # Batch tile: big tiles for pipelining, single tile for small batches.
    tb = _TB_MAX if B >= _TB_MAX else _round_up(B, 8)
    b_pad = _round_up(B, tb)
    n_blocks = b_pad // tb

    xp = x if b_pad == B else jnp.pad(x, ((0, b_pad - B), (0, 0)))

    # Zero-pad hidden dim 200 -> 256; padded rows/cols contribute exactly 0.
    hpad = HIDDEN_PAD - HIDDEN_DIM
    w1p = jnp.pad(w1.astype(jnp.float32), ((0, hpad), (0, 0)))          # (256, 24)
    b1p = jnp.pad(b1.astype(jnp.float32), (0, hpad)).reshape(HIDDEN_PAD, 1)
    w2p = jnp.pad(w2.astype(jnp.float32), ((0, 0), (0, hpad)))          # (1, 256)
    b2p = b2.astype(jnp.float32).reshape(1, OUT_DIM)                    # (1, 1)

    out_row = pl.pallas_call(
        mlp_kernel,
        out_shape=jax.ShapeDtypeStruct((1, b_pad), x.dtype),
        grid=(n_blocks,),
        in_specs=[
            pl.BlockSpec((tb, INPUT_DIM), lambda i: (i, 0)),           # x tile
            pl.BlockSpec((HIDDEN_PAD, INPUT_DIM), lambda i: (0, 0)),   # w1 (resident)
            pl.BlockSpec((HIDDEN_PAD, 1), lambda i: (0, 0)),           # b1 (resident)
            pl.BlockSpec((1, HIDDEN_PAD), lambda i: (0, 0)),           # w2 (resident)
            pl.BlockSpec((1, OUT_DIM), lambda i: (0, 0)),              # b2 (resident)
        ],
        out_specs=pl.BlockSpec((1, tb), lambda i: (0, i)),             # lane-dense out
        compiler_params=pltpu.CompilerParams(
            dimension_semantics=("parallel",),                         # megacore on v7x
        ),
    )(xp, w1p, b1p, w2p, b2p)

    # (1, B_pad) -> (B, 1); contiguity-preserving reshape + slice (free in XLA).
    return out_row.reshape(b_pad, OUT_DIM)[:B]


if __name__ == "__main__":
    key = jax.random.PRNGKey(0)
    k_x, k_w1, k_b1, k_w2, k_b2, k_x2 = jax.random.split(key, 6)

    # Parameters with nn.Linear shapes (out_features, in_features).
    bound1 = 1.0 / (INPUT_DIM ** 0.5)
    w1 = jax.random.uniform(k_w1, (HIDDEN_DIM, INPUT_DIM), jnp.float32, -bound1, bound1)
    b1 = jax.random.uniform(k_b1, (HIDDEN_DIM,), jnp.float32, -bound1, bound1)
    bound2 = 1.0 / (HIDDEN_DIM ** 0.5)
    w2 = jax.random.uniform(k_w2, (OUT_DIM, HIDDEN_DIM), jnp.float32, -bound2, bound2)
    b2 = jax.random.uniform(k_b2, (OUT_DIM,), jnp.float32, -bound2, bound2)

    def ref_forward(xx):
        h = jnp.maximum(
            jnp.dot(xx, w1.T, precision=jax.lax.Precision.HIGHEST) + b1, 0.0)
        return jnp.dot(h, w2.T, precision=jax.lax.Precision.HIGHEST) + b2

    # Small batch (single grid step), matches the module's typical usage.
    B_small = 8
    x_small = jax.random.normal(k_x, (B_small, INPUT_DIM), dtype=jnp.float32)
    out_small = jax.block_until_ready(two_layer_mlp(x_small, w1, b1, w2, b2))
    assert out_small.shape == (B_small, OUT_DIM)
    assert bool(jnp.allclose(out_small, ref_forward(x_small), atol=1e-4, rtol=1e-4))

    # Larger, non-multiple batch: exercises the tiled/pipelined path + padding.
    B_big = 2500
    x_big = jax.random.normal(k_x2, (B_big, INPUT_DIM), dtype=jnp.float32)
    out_big = jax.block_until_ready(two_layer_mlp(x_big, w1, b1, w2, b2))
    assert out_big.shape == (B_big, OUT_DIM)
    assert bool(jnp.allclose(out_big, ref_forward(x_big), atol=1e-4, rtol=1e-4))

    print("KERNEL_OK")
</pallas_src>

<mosaic_0001>
module attributes {stable_mosaic.version = 11 : i64} {
  func.func @mlp_kernel(%arg0: i32, %arg1: memref<8x24xf32, #tpu.memory_space<vmem>>, %arg2: memref<256x24xf32, #tpu.memory_space<vmem>>, %arg3: memref<256x1xf32, #tpu.memory_space<vmem>>, %arg4: memref<1x256xf32, #tpu.memory_space<vmem>>, %arg5: memref<1x1xf32, #tpu.memory_space<vmem>>, %arg6: memref<1x8xf32, #tpu.memory_space<vmem>>) attributes {dimension_semantics = [#tpu.dimension_semantics<parallel>], iteration_bounds = array<i64: 1>, scalar_prefetch = 0 : i64, scratch_operands = 0 : i64, tpu.core_type = #tpu.core_type<tc>, window_params = [{transform_indices = @transform_0, window_bounds = array<i64: 8, 24>}, {pipeline_mode = #tpu.pipeline_mode<synchronous>, transform_indices = @transform_1, window_bounds = array<i64: 256, 24>}, {pipeline_mode = #tpu.pipeline_mode<synchronous>, transform_indices = @transform_2, window_bounds = array<i64: 256, 1>}, {pipeline_mode = #tpu.pipeline_mode<synchronous>, transform_indices = @transform_3, window_bounds = array<i64: 1, 256>}, {pipeline_mode = #tpu.pipeline_mode<synchronous>, transform_indices = @transform_4, window_bounds = array<i64: 1, 1>}, {transform_indices = @transform_5, window_bounds = array<i64: 1, 8>}]} {
    %c0 = arith.constant 0 : index
    %c0_0 = arith.constant 0 : index
    %0 = vector.load %arg1[%c0, %c0_0] : memref<8x24xf32, #tpu.memory_space<vmem>>, vector<8x24xf32>
    %c0_1 = arith.constant 0 : index
    %c0_2 = arith.constant 0 : index
    %1 = vector.load %arg2[%c0_1, %c0_2] : memref<256x24xf32, #tpu.memory_space<vmem>>, vector<256x24xf32>
    %cst = arith.constant dense<0.000000e+00> : vector<256x8xf32>
    %2 = tpu.matmul %1, %0, %cst {dimension_numbers = #tpu.dot_dimension_numbers<[1], [1], [0], [0], [0, 0, 1, 0], [], []>} : vector<256x24xf32>, vector<8x24xf32>, vector<256x8xf32> -> vector<256x8xf32>
    %c0_3 = arith.constant 0 : index
    %c0_4 = arith.constant 0 : index
    %3 = vector.load %arg3[%c0_3, %c0_4] : memref<256x1xf32, #tpu.memory_space<vmem>>, vector<256x1xf32>
    %4 = vector.broadcast %3 : vector<256x1xf32> to vector<256x8xf32>
    %5 = arith.addf %2, %4 : vector<256x8xf32>
    %cst_5 = arith.constant 0.000000e+00 : f32
    %6 = vector.broadcast %cst_5 : f32 to vector<256x8xf32>
    %7 = arith.maximumf %5, %6 : vector<256x8xf32>
    %c0_6 = arith.constant 0 : index
    %c0_7 = arith.constant 0 : index
    %8 = vector.load %arg4[%c0_6, %c0_7] : memref<1x256xf32, #tpu.memory_space<vmem>>, vector<1x256xf32>
    %cst_8 = arith.constant dense<0.000000e+00> : vector<1x8xf32>
    %9 = tpu.matmul %8, %7, %cst_8 {dimension_numbers = #tpu.dot_dimension_numbers<[1], [0], [0], [1], [0, 0, 1, 1], [], []>} : vector<1x256xf32>, vector<256x8xf32>, vector<1x8xf32> -> vector<1x8xf32>
    %c0_9 = arith.constant 0 : index
    %c0_10 = arith.constant 0 : index
    %10 = vector.load %arg5[%c0_9, %c0_10] : memref<1x1xf32, #tpu.memory_space<vmem>>, vector<1x1xf32>
    %11 = vector.broadcast %10 : vector<1x1xf32> to vector<1x8xf32>
    %12 = arith.addf %9, %11 : vector<1x8xf32>
    %c0_11 = arith.constant 0 : index
    %c0_12 = arith.constant 0 : index
    %13 = vector.load %arg6[%c0_11, %c0_12] : memref<1x8xf32, #tpu.memory_space<vmem>>, vector<1x8xf32>
    tpu.vector_store %arg6[%c0_11, %c0_12], %12 {strides = array<i32>} : memref<1x8xf32, #tpu.memory_space<vmem>>, vector<1x8xf32>,
    return
  }
  func.func @transform_0(%arg0: i32) -> (i32, i32) {
    %c0_i32 = arith.constant 0 : i32
    %c0_i32_0 = arith.constant 0 : i32
    return %arg0, %c0_i32 : i32, i32
  }
  func.func @transform_1(%arg0: i32) -> (i32, i32) {
    %c0_i32 = arith.constant 0 : i32
    %c0_i32_0 = arith.constant 0 : i32
    %c0_i32_1 = arith.constant 0 : i32
    return %c0_i32, %c0_i32_0 : i32, i32
  }
  func.func @transform_2(%arg0: i32) -> (i32, i32) {
    %c0_i32 = arith.constant 0 : i32
    %c0_i32_0 = arith.constant 0 : i32
    %c0_i32_1 = arith.constant 0 : i32
    return %c0_i32, %c0_i32_0 : i32, i32
  }
  func.func @transform_3(%arg0: i32) -> (i32, i32) {
    %c0_i32 = arith.constant 0 : i32
    %c0_i32_0 = arith.constant 0 : i32
    %c0_i32_1 = arith.constant 0 : i32
    return %c0_i32, %c0_i32_0 : i32, i32
  }
  func.func @transform_4(%arg0: i32) -> (i32, i32) {
    %c0_i32 = arith.constant 0 : i32
    %c0_i32_0 = arith.constant 0 : i32
    %c0_i32_1 = arith.constant 0 : i32
    return %c0_i32, %c0_i32_0 : i32, i32
  }
  func.func @transform_5(%arg0: i32) -> (i32, i32) {
    %c0_i32 = arith.constant 0 : i32
    %c0_i32_0 = arith.constant 0 : i32
    return %c0_i32, %arg0 : i32, i32
  }
}

</mosaic_0001>

<llo_original>
// kernel: tpu_custom_call.1
$region0: #{tpu_custom_call.1}
  #allocation0 [shape = 'u32[]', space=smem, size = 0x4, offset = 0x4, fixed_abs, tag = 'smem constant byte address 0x4 - core index']
  #allocation1 [shape = 'u32[72,128]{1,0:T(1,128)}', space=vmem, size = 0x9000, scoped, tag = 'internal scratch']
  #allocation2 [shape = 'f32[1,1]{1,0:T(1,128)S(1)}', space=vmem, size = 0x200, scoped, tag = 'scoped memory for tpu_custom_call.1']
  %s0 = inlined_call_operand.vmem [shape: f32[8,24], index: 0, kind: input, shape index: {}]
  %s1 = inlined_call_operand.vmem [shape: f32[256,24], index: 1, kind: input, shape index: {}]
  %s2 = inlined_call_operand.vmem [shape: f32[256,1], index: 2, kind: input, shape index: {}]
  %s3 = inlined_call_operand.vmem [shape: f32[1,256], index: 3, kind: input, shape index: {}]
  %s4 = inlined_call_operand.<no memory space> [shape: f32[1,1], index: 4, kind: input, shape index: {}]
  %s5 = inlined_call_operand.hbm [shape: f32[1,8], index: 5, kind: output, shape index: {}]
  %s6 = sld [smem:[#allocation0]]
  $region30: #{tpu_custom_call.1} parent=0
    _
  %s8 = ssub.s32 1, %s6
  %s9 = scalar_select 0, %s8, %s6
  %v10 = vstv %s4
  %11 = vst [vmem:[#allocation2] sm:$0x1] %v10
  $region1: #{tpu_custom_call.1} parent=0
    #allocation3 [shape = 'u8[512]{0}', space=vmem, size = 0x400, scoped, tag = 'output window, operand 0, single buffered']
    #allocation4 [shape = 's32[1]{0}', space=sflag, size = 0x4, scoped, tag = 'scoped memory for tpu_custom_call.1']
    %12 = vsyncpa [#allocation4], 0
    // Predicated region
    $region2: #{tpu_custom_call.1} parent=1 // pred_check
      _
    $region3: #{tpu_custom_call.1} parent=1 // pred_check_branch
      %14 = sbr.rel (0) target = $region5
    $region4: #{tpu_custom_call.1} parent=1 // pred_region
      _
    $region5: #{tpu_custom_call.1} parent=1 // pred_fallthru
      _
    // Predicated region
    $region6: #{tpu_custom_call.1} parent=1 // pred_check
      _
    $region7: #{tpu_custom_call.1} parent=1 // pred_check_branch
      %16 = sbr.rel (0) target = $region9
    $region8: #{tpu_custom_call.1} parent=1 // pred_region
      _
    $region9: #{tpu_custom_call.1} parent=1 // pred_fallthru
      _
    // Predicated region
    $region10: #{tpu_custom_call.1} parent=1 // pred_check
      _
    $region11: #{tpu_custom_call.1} parent=1 // pred_check_branch
      %18 = sbr.rel (0) target = $region13
    $region12: #{tpu_custom_call.1} parent=1 // pred_region
      _
    $region13: #{tpu_custom_call.1} parent=1 // pred_fallthru
      _
    // Predicated region
    $region14: #{tpu_custom_call.1} parent=1 // pred_check
      _
    $region15: #{tpu_custom_call.1} parent=1 // pred_check_branch
      %20 = sbr.rel (0) target = $region17
    $region16: #{tpu_custom_call.1} parent=1 // pred_region
      _
    $region17: #{tpu_custom_call.1} parent=1 // pred_fallthru
      _
    // Predicated region
    $region18: #{tpu_custom_call.1} parent=1 // pred_check
      _
    $region19: #{tpu_custom_call.1} parent=1 // pred_check_branch
      %22 = sbr.rel (0) target = $region21
    $region20: #{tpu_custom_call.1} parent=1 // pred_region
      _
    $region21: #{tpu_custom_call.1} parent=1 // pred_fallthru
      _
    %v23 = vld [vmem:[%s0] sm:$0xff]
    %v24 = vld [vmem:[%s1] sm:$0xff]
    %v25 = vld [vmem:[%s1 + $0x8] sm:$0xff]
    %v26 = vld [vmem:[%s1 + $0x10] sm:$0xff]
    %v27 = vld [vmem:[%s1 + $0x18] sm:$0xff]
    %v28 = vld [vmem:[%s1 + $0x20] sm:$0xff]
    %v29 = vld [vmem:[%s1 + $0x28] sm:$0xff]
    %v30 = vld [vmem:[%s1 + $0x30] sm:$0xff]
    %v31 = vld [vmem:[%s1 + $0x38] sm:$0xff]
    %v32 = vld [vmem:[%s1 + $0x40] sm:$0xff]
    %v33 = vld [vmem:[%s1 + $0x48] sm:$0xff]
    %v34 = vld [vmem:[%s1 + $0x50] sm:$0xff]
    %v35 = vld [vmem:[%s1 + $0x58] sm:$0xff]
    %v36 = vld [vmem:[%s1 + $0x60] sm:$0xff]
    %v37 = vld [vmem:[%s1 + $0x68] sm:$0xff]
    %v38 = vld [vmem:[%s1 + $0x70] sm:$0xff]
    %v39 = vld [vmem:[%s1 + $0x78] sm:$0xff]
    %v40 = vld [vmem:[%s1 + $0x80] sm:$0xff]
    %v41 = vld [vmem:[%s1 + $0x88] sm:$0xff]
    %v42 = vld [vmem:[%s1 + $0x90] sm:$0xff]
    %v43 = vld [vmem:[%s1 + $0x98] sm:$0xff]
    %v44 = vld [vmem:[%s1 + $0xa0] sm:$0xff]
    %v45 = vld [vmem:[%s1 + $0xa8] sm:$0xff]
    %v46 = vld [vmem:[%s1 + $0xb0] sm:$0xff]
    %v47 = vld [vmem:[%s1 + $0xb8] sm:$0xff]
    %v48 = vld [vmem:[%s1 + $0xc0] sm:$0xff]
    %v49 = vld [vmem:[%s1 + $0xc8] sm:$0xff]
    %v50 = vld [vmem:[%s1 + $0xd0] sm:$0xff]
    %v51 = vld [vmem:[%s1 + $0xd8] sm:$0xff]
    %v52 = vld [vmem:[%s1 + $0xe0] sm:$0xff]
    %v53 = vld [vmem:[%s1 + $0xe8] sm:$0xff]
    %v54 = vld [vmem:[%s1 + $0xf0] sm:$0xff]
    %v55 = vld [vmem:[%s1 + $0xf8] sm:$0xff]
    %v56 = vld [vmem:[%s2] sm:$0xff]
    %v57 = vld [vmem:[%s2 + $0x8] sm:$0xff]
    %v58 = vld [vmem:[%s2 + $0x10] sm:$0xff]
    %v59 = vld [vmem:[%s2 + $0x18] sm:$0xff]
    %v60 = vld [vmem:[%s2 + $0x20] sm:$0xff]
    %v61 = vld [vmem:[%s2 + $0x28] sm:$0xff]
    %v62 = vld [vmem:[%s2 + $0x30] sm:$0xff]
    %v63 = vld [vmem:[%s2 + $0x38] sm:$0xff]
    %v64 = vld [vmem:[%s2 + $0x40] sm:$0xff]
    %v65 = vld [vmem:[%s2 + $0x48] sm:$0xff]
    %v66 = vld [vmem:[%s2 + $0x50] sm:$0xff]
    %v67 = vld [vmem:[%s2 + $0x58] sm:$0xff]
    %v68 = vld [vmem:[%s2 + $0x60] sm:$0xff]
    %v69 = vld [vmem:[%s2 + $0x68] sm:$0xff]
    %v70 = vld [vmem:[%s2 + $0x70] sm:$0xff]
    %v71 = vld [vmem:[%s2 + $0x78] sm:$0xff]
    %v72 = vld [vmem:[%s2 + $0x80] sm:$0xff]
    %v73 = vld [vmem:[%s2 + $0x88] sm:$0xff]
    %v74 = vld [vmem:[%s2 + $0x90] sm:$0xff]
    %v75 = vld [vmem:[%s2 + $0x98] sm:$0xff]
    %v76 = vld [vmem:[%s2 + $0xa0] sm:$0xff]
    %v77 = vld [vmem:[%s2 + $0xa8] sm:$0xff]
    %v78 = vld [vmem:[%s2 + $0xb0] sm:$0xff]
    %v79 = vld [vmem:[%s2 + $0xb8] sm:$0xff]
    %v80 = vld [vmem:[%s2 + $0xc0] sm:$0xff]
    %v81 = vld [vmem:[%s2 + $0xc8] sm:$0xff]
    %v82 = vld [vmem:[%s2 + $0xd0] sm:$0xff]
    %v83 = vld [vmem:[%s2 + $0xd8] sm:$0xff]
    %v84 = vld [vmem:[%s2 + $0xe0] sm:$0xff]
    %v85 = vld [vmem:[%s2 + $0xe8] sm:$0xff]
    %v86 = vld [vmem:[%s2 + $0xf0] sm:$0xff]
    %v87 = vld [vmem:[%s2 + $0xf8] sm:$0xff]
    %89 = vset.pattern.permute.xlu0 0
    %90 = vperm.xlu0 %89, %v56
    %v91 = vpop.permute.xlu0 %90
    %94 = vset.pattern.permute.xlu0 0
    %95 = vperm.xlu0 %94, %v57
    %v96 = vpop.permute.xlu0 %95
    %99 = vset.pattern.permute.xlu0 0
    %100 = vperm.xlu0 %99, %v58
    %v101 = vpop.permute.xlu0 %100
    %104 = vset.pattern.permute.xlu0 0
    %105 = vperm.xlu0 %104, %v59
    %v106 = vpop.permute.xlu0 %105
    %109 = vset.pattern.permute.xlu0 0
    %110 = vperm.xlu0 %109, %v60
    %v111 = vpop.permute.xlu0 %110
    %114 = vset.pattern.permute.xlu0 0
    %115 = vperm.xlu0 %114, %v61
    %v116 = vpop.permute.xlu0 %115
    %119 = vset.pattern.permute.xlu0 0
    %120 = vperm.xlu0 %119, %v62
    %v121 = vpop.permute.xlu0 %120
    %124 = vset.pattern.permute.xlu0 0
    %125 = vperm.xlu0 %124, %v63
    %v126 = vpop.permute.xlu0 %125
    %129 = vset.pattern.permute.xlu0 0
    %130 = vperm.xlu0 %129, %v64
    %v131 = vpop.permute.xlu0 %130
    %134 = vset.pattern.permute.xlu0 0
    %135 = vperm.xlu0 %134, %v65
    %v136 = vpop.permute.xlu0 %135
    %139 = vset.pattern.permute.xlu0 0
    %140 = vperm.xlu0 %139, %v66
    %v141 = vpop.permute.xlu0 %140
    %144 = vset.pattern.permute.xlu0 0
    %145 = vperm.xlu0 %144, %v67
    %v146 = vpop.permute.xlu0 %145
    %149 = vset.pattern.permute.xlu0 0
    %150 = vperm.xlu0 %149, %v68
    %v151 = vpop.permute.xlu0 %150
    %154 = vset.pattern.permute.xlu0 0
    %155 = vperm.xlu0 %154, %v69
    %v156 = vpop.permute.xlu0 %155
    %159 = vset.pattern.permute.xlu0 0
    %160 = vperm.xlu0 %159, %v70
    %v161 = vpop.permute.xlu0 %160
    %164 = vset.pattern.permute.xlu0 0
    %165 = vperm.xlu0 %164, %v71
    %v166 = vpop.permute.xlu0 %165
    %169 = vset.pattern.permute.xlu0 0
    %170 = vperm.xlu0 %169, %v72
    %v171 = vpop.permute.xlu0 %170
    %174 = vset.pattern.permute.xlu0 0
    %175 = vperm.xlu0 %174, %v73
    %v176 = vpop.permute.xlu0 %175
    %179 = vset.pattern.permute.xlu0 0
    %180 = vperm.xlu0 %179, %v74
    %v181 = vpop.permute.xlu0 %180
    %184 = vset.pattern.permute.xlu0 0
    %185 = vperm.xlu0 %184, %v75
    %v186 = vpop.permute.xlu0 %185
    %189 = vset.pattern.permute.xlu0 0
    %190 = vperm.xlu0 %189, %v76
    %v191 = vpop.permute.xlu0 %190
    %194 = vset.pattern.permute.xlu0 0
    %195 = vperm.xlu0 %194, %v77
    %v196 = vpop.permute.xlu0 %195
    %199 = vset.pattern.permute.xlu0 0
    %200 = vperm.xlu0 %199, %v78
    %v201 = vpop.permute.xlu0 %200
    %204 = vset.pattern.permute.xlu0 0
    %205 = vperm.xlu0 %204, %v79
    %v206 = vpop.permute.xlu0 %205
    %209 = vset.pattern.permute.xlu0 0
    %210 = vperm.xlu0 %209, %v80
    %v211 = vpop.permute.xlu0 %210
    %214 = vset.pattern.permute.xlu0 0
    %215 = vperm.xlu0 %214, %v81
    %v216 = vpop.permute.xlu0 %215
    %219 = vset.pattern.permute.xlu0 0
    %220 = vperm.xlu0 %219, %v82
    %v221 = vpop.permute.xlu0 %220
    %224 = vset.pattern.permute.xlu0 0
    %225 = vperm.xlu0 %224, %v83
    %v226 = vpop.permute.xlu0 %225
    %229 = vset.pattern.permute.xlu0 0
    %230 = vperm.xlu0 %229, %v84
    %v231 = vpop.permute.xlu0 %230
    %234 = vset.pattern.permute.xlu0 0
    %235 = vperm.xlu0 %234, %v85
    %v236 = vpop.permute.xlu0 %235
    %239 = vset.pattern.permute.xlu0 0
    %240 = vperm.xlu0 %239, %v86
    %v241 = vpop.permute.xlu0 %240
    %244 = vset.pattern.permute.xlu0 0
    %245 = vperm.xlu0 %244, %v87
    %v246 = vpop.permute.xlu0 %245
    %vm248 = vcmask 195584
    %v250 = vsel %vm248, %v24, 0
    %v253 = vsel %vm248, %v25, 0
    %v256 = vsel %vm248, %v26, 0
    %v259 = vsel %vm248, %v27, 0
    %v262 = vsel %vm248, %v28, 0
    %v265 = vsel %vm248, %v29, 0
    %v268 = vsel %vm248, %v30, 0
    %v271 = vsel %vm248, %v31, 0
    %v274 = vsel %vm248, %v32, 0
    %v277 = vsel %vm248, %v33, 0
    %v280 = vsel %vm248, %v34, 0
    %v283 = vsel %vm248, %v35, 0
    %v286 = vsel %vm248, %v36, 0
    %v289 = vsel %vm248, %v37, 0
    %v292 = vsel %vm248, %v38, 0
    %v295 = vsel %vm248, %v39, 0
    %v298 = vsel %vm248, %v40, 0
    %v301 = vsel %vm248, %v41, 0
    %v304 = vsel %vm248, %v42, 0
    %v307 = vsel %vm248, %v43, 0
    %v310 = vsel %vm248, %v44, 0
    %v313 = vsel %vm248, %v45, 0
    %v316 = vsel %vm248, %v46, 0
    %v319 = vsel %vm248, %v47, 0
    %v322 = vsel %vm248, %v48, 0
    %v325 = vsel %vm248, %v49, 0
    %v328 = vsel %vm248, %v50, 0
    %v331 = vsel %vm248, %v51, 0
    %v334 = vsel %vm248, %v52, 0
    %v337 = vsel %vm248, %v53, 0
    %v340 = vsel %vm248, %v54, 0
    %v343 = vsel %vm248, %v55, 0
    %v346 = vsel %vm248, %v23, 0
    %348 = vmatpush.xpose.msra.mxu0 0.0
    %349 = vmatpush.xpose.msra.mxu0 0.0
    %350 = vmatpush.xpose.msra.mxu0 0.0
    %351 = vmatpush.xpose.msra.mxu0 0.0
    %352 = vmatpush.xpose.msra.mxu0 0.0
    %353 = vmatpush.xpose.msra.mxu0 0.0
    %354 = vmatpush.xpose.msra.mxu0 0.0
    %355 = vmatpush.xpose.msra.mxu0 0.0
    %356 = vmatpush.xpose.msra.mxu0 0.0
    %357 = vmatpush.xpose.msra.mxu0 0.0
    %358 = vmatpush.xpose.msra.mxu0 0.0
    %359 = vmatpush.xpose.msra.mxu0 0.0
    %360 = vmatpush.xpose.msra.mxu0 0.0
    %361 = vmatpush.xpose.msra.mxu0 0.0
    %362 = vmatpush.xpose.msra.mxu0 0.0
    %363 = vmatpush.xpose.msra.mxu0 %v346
    %364 = vmatmul.f32.gmra.mxu0 %v250
    %v365 = vpop.f32.mrf.mxu0
    %v366 = vadd.f32 %v91, %v365
    %367 = vmatmul.f32.gmra.mxu0 %v253
    %v368 = vpop.f32.mrf.mxu0
    %v369 = vadd.f32 %v96, %v368
    %370 = vmatmul.f32.gmra.mxu0 %v256
    %v371 = vpop.f32.mrf.mxu0
    %v372 = vadd.f32 %v101, %v371
    %373 = vmatmul.f32.gmra.mxu0 %v259
    %v374 = vpop.f32.mrf.mxu0
    %v375 = vadd.f32 %v106, %v374
    %376 = vmatmul.f32.gmra.mxu0 %v262
    %v377 = vpop.f32.mrf.mxu0
    %v378 = vadd.f32 %v111, %v377
    %379 = vmatmul.f32.gmra.mxu0 %v265
    %v380 = vpop.f32.mrf.mxu0
    %v381 = vadd.f32 %v116, %v380
    %382 = vmatmul.f32.gmra.mxu0 %v268
    %v383 = vpop.f32.mrf.mxu0
    %v384 = vadd.f32 %v121, %v383
    %385 = vmatmul.f32.gmra.mxu0 %v271
    %v386 = vpop.f32.mrf.mxu0
    %v387 = vadd.f32 %v126, %v386
    %388 = vmatmul.f32.gmra.mxu0 %v274
    %v389 = vpop.f32.mrf.mxu0
    %v390 = vadd.f32 %v131, %v389
    %391 = vmatmul.f32.gmra.mxu0 %v277
    %v392 = vpop.f32.mrf.mxu0
    %v393 = vadd.f32 %v136, %v392
    %394 = vmatmul.f32.gmra.mxu0 %v280
    %v395 = vpop.f32.mrf.mxu0
    %v396 = vadd.f32 %v141, %v395
    %397 = vmatmul.f32.gmra.mxu0 %v283
    %v398 = vpop.f32.mrf.mxu0
    %v399 = vadd.f32 %v146, %v398
    %400 = vmatmul.f32.gmra.mxu0 %v286
    %v401 = vpop.f32.mrf.mxu0
    %v402 = vadd.f32 %v151, %v401
    %403 = vmatmul.f32.gmra.mxu0 %v289
    %v404 = vpop.f32.mrf.mxu0
    %v405 = vadd.f32 %v156, %v404
    %406 = vmatmul.f32.gmra.mxu0 %v292
    %v407 = vpop.f32.mrf.mxu0
    %v408 = vadd.f32 %v161, %v407
    %409 = vmatmul.f32.gmra.mxu0 %v295
    %v410 = vpop.f32.mrf.mxu0
    %v411 = vadd.f32 %v166, %v410
    %412 = vmatmul.f32.gmra.mxu0 %v298
    %v413 = vpop.f32.mrf.mxu0
    %v414 = vadd.f32 %v171, %v413
    %415 = vmatmul.f32.gmra.mxu0 %v301
    %v416 = vpop.f32.mrf.mxu0
    %v417 = vadd.f32 %v176, %v416
    %418 = vmatmul.f32.gmra.mxu0 %v304
    %v419 = vpop.f32.mrf.mxu0
    %v420 = vadd.f32 %v181, %v419
    %421 = vmatmul.f32.gmra.mxu0 %v307
    %v422 = vpop.f32.mrf.mxu0
    %v423 = vadd.f32 %v186, %v422
    %424 = vmatmul.f32.gmra.mxu0 %v310
    %v425 = vpop.f32.mrf.mxu0
    %v426 = vadd.f32 %v191, %v425
    %427 = vmatmul.f32.gmra.mxu0 %v313
    %v428 = vpop.f32.mrf.mxu0
    %v429 = vadd.f32 %v196, %v428
    %430 = vmatmul.f32.gmra.mxu0 %v316
    %v431 = vpop.f32.mrf.mxu0
    %v432 = vadd.f32 %v201, %v431
    %433 = vmatmul.f32.gmra.mxu0 %v319
    %v434 = vpop.f32.mrf.mxu0
    %v435 = vadd.f32 %v206, %v434
    %436 = vmatmul.f32.gmra.mxu0 %v322
    %v437 = vpop.f32.mrf.mxu0
    %v438 = vadd.f32 %v211, %v437
    %439 = vmatmul.f32.gmra.mxu0 %v325
    %v440 = vpop.f32.mrf.mxu0
    %v441 = vadd.f32 %v216, %v440
    %442 = vmatmul.f32.gmra.mxu0 %v328
    %v443 = vpop.f32.mrf.mxu0
    %v444 = vadd.f32 %v221, %v443
    %445 = vmatmul.f32.gmra.mxu0 %v331
    %v446 = vpop.f32.mrf.mxu0
    %v447 = vadd.f32 %v226, %v446
    %448 = vmatmul.f32.gmra.mxu0 %v334
    %v449 = vpop.f32.mrf.mxu0
    %v450 = vadd.f32 %v231, %v449
    %451 = vmatmul.f32.gmra.mxu0 %v337
    %v452 = vpop.f32.mrf.mxu0
    %v453 = vadd.f32 %v236, %v452
    %454 = vmatmul.f32.gmra.mxu0 %v340
    %v455 = vpop.f32.mrf.mxu0
    %v456 = vadd.f32 %v241, %v455
    %457 = vmatmul.f32.gmra.mxu0 %v343
    %v458 = vpop.f32.mrf.mxu0
    %v459 = vadd.f32 %v246, %v458
    %460 = vdwg.mxu0
    %v461 = vmax.f32 %v366, 0.0
    %v462 = vmax.f32 %v369, 0.0
    %v463 = vmax.f32 %v372, 0.0
    %v464 = vmax.f32 %v375, 0.0
    %v465 = vmax.f32 %v378, 0.0
    %v466 = vmax.f32 %v381, 0.0
    %v467 = vmax.f32 %v384, 0.0
    %v468 = vmax.f32 %v387, 0.0
    %v469 = vmax.f32 %v390, 0.0
    %v470 = vmax.f32 %v393, 0.0
    %v471 = vmax.f32 %v396, 0.0
    %v472 = vmax.f32 %v399, 0.0
    %v473 = vmax.f32 %v402, 0.0
    %v474 = vmax.f32 %v405, 0.0
    %v475 = vmax.f32 %v408, 0.0
    %v476 = vmax.f32 %v411, 0.0
    %v477 = vmax.f32 %v414, 0.0
    %v478 = vmax.f32 %v417, 0.0
    %v479 = vmax.f32 %v420, 0.0
    %v480 = vmax.f32 %v423, 0.0
    %v481 = vmax.f32 %v426, 0.0
    %v482 = vmax.f32 %v429, 0.0
    %v483 = vmax.f32 %v432, 0.0
    %v484 = vmax.f32 %v435, 0.0
    %v485 = vmax.f32 %v438, 0.0
    %v486 = vmax.f32 %v441, 0.0
    %v487 = vmax.f32 %v444, 0.0
    %v488 = vmax.f32 %v447, 0.0
    %v489 = vmax.f32 %v450, 0.0
    %v490 = vmax.f32 %v453, 0.0
    %v491 = vmax.f32 %v456, 0.0
    %v492 = vmax.f32 %v459, 0.0
    %v493 = vld [vmem:[%s3] sm:$0x3]
    %v494 = vld [vmem:[#allocation2] sm:$0x1]
    %496 = vset.pattern.permute.xlu0 0
    %497 = vperm.xlu0 %496, %v494
    %v498 = vpop.permute.xlu0 %497
    %v500 = vperm.slane %v498, 0
    %v502 = vperm.slane %v493, 0
    %v503 = vperm.slane %v493, 1
    %506 = vmatpush.msra.mxu0 %v476
    %507 = vmatpush.msra.mxu0 %v475
    %508 = vmatpush.msra.mxu0 %v474
    %509 = vmatpush.msra.mxu0 %v473
    %510 = vmatpush.msra.mxu0 %v472
    %511 = vmatpush.msra.mxu0 %v471
    %512 = vmatpush.msra.mxu0 %v470
    %513 = vmatpush.msra.mxu0 %v469
    %514 = vmatpush.msra.mxu0 %v468
    %515 = vmatpush.msra.mxu0 %v467
    %516 = vmatpush.msra.mxu0 %v466
    %517 = vmatpush.msra.mxu0 %v465
    %518 = vmatpush.msra.mxu0 %v464
    %519 = vmatpush.msra.mxu0 %v463
    %520 = vmatpush.msra.mxu0 %v462
    %521 = vmatpush.msra.mxu0 %v461
    %522 = vmatmul.f32.gmra.mxu0 %v502
    %v523 = vpop.f32.mrf.mxu0
    %v524 = vadd.f32 %v500, %v523
    %525 = vdwg.mxu0
    %526 = vmatpush.msra.mxu0 %v492
    %527 = vmatpush.msra.mxu0 %v491
    %528 = vmatpush.msra.mxu0 %v490
    %529 = vmatpush.msra.mxu0 %v489
    %530 = vmatpush.msra.mxu0 %v488
    %531 = vmatpush.msra.mxu0 %v487
    %532 = vmatpush.msra.mxu0 %v486
    %533 = vmatpush.msra.mxu0 %v485
    %534 = vmatpush.msra.mxu0 %v484
    %535 = vmatpush.msra.mxu0 %v483
    %536 = vmatpush.msra.mxu0 %v482
    %537 = vmatpush.msra.mxu0 %v481
    %538 = vmatpush.msra.mxu0 %v480
    %539 = vmatpush.msra.mxu0 %v479
    %540 = vmatpush.msra.mxu0 %v478
    %541 = vmatpush.msra.mxu0 %v477
    %542 = vmatmul.f32.gmra.mxu0 %v503
    %v543 = vpop.f32.mrf.mxu0
    %v544 = vadd.f32 %v524, %v543
    %545 = vdwg.mxu0
    %vm546 = vcmask 57344
    %547 = vst.msk [vmem:[#allocation3] sm:$0x1] %vm546, %v544
    // Predicated region
    $region22: #{tpu_custom_call.1} parent=1 // pred_check
      _
    $region23: #{tpu_custom_call.1} parent=1 // pred_check_branch
      %549 = sbr.rel (0) target = $region25
    $region24: #{tpu_custom_call.1} parent=1 // pred_region
      %551 = vsyncadd [#allocation4], 0
      %s553 = sshll.u32 [#allocation3], 4
      %s554 = int_to_ptr.vmem [resolvable:$true] %s553
      %s555 = sshll.u32 %s5, 4
      %s556 = int_to_ptr.hbm [resolvable:$true] %s555
      %558 = dma.vmem_to_hbm [thread:$0]  %s554, 16, %s556, [#allocation4]
    $region25: #{tpu_custom_call.1} parent=1 // pred_fallthru
      _
    // Predicated region
    $region26: #{tpu_custom_call.1} parent=1 // pred_check
      _
    $region27: #{tpu_custom_call.1} parent=1 // pred_check_branch
      %560 = sbr.rel (0) target = $region29
    $region28: #{tpu_custom_call.1} parent=1 // pred_region
      %562 = dma.done [#allocation4], 16
    $region29: #{tpu_custom_call.1} parent=1 // pred_fallthru
      _
    %563 = vsyncpa [#allocation4], 1

</llo_original>
